<compile_context>
chip_gen: v7x
topology: tpu7x:2x2x1
jax: 0.10.0
libtpu: 0.0.40
codegen_flags: <defaults>
</compile_context>

<pallas_src>
import functools

import jax
import jax.numpy as jnp
from jax.experimental import pallas as pl
from jax.experimental.pallas import tpu as pltpu

EPS = 1e-5  # nn.InstanceNorm3d default eps


def _im2col_stride2(x, Do, Ho, Wo):
    # x: [N, C, D, H, W] -> patches [N, C*27, S] for a 3x3x3 / stride 2 / pad 1 conv.
    # K index = ci*27 + kd*9 + kh*3 + kw, matching weight.reshape(C_out, C_in*27).
    N, C = x.shape[:2]
    S = Do * Ho * Wo
    xp = jnp.pad(x, ((0, 0), (0, 0), (1, 1), (1, 1), (1, 1)))
    cols = []
    for kd in range(3):
        for kh in range(3):
            for kw in range(3):
                v = xp[:, :, kd:kd + 2 * Do:2, kh:kh + 2 * Ho:2, kw:kw + 2 * Wo:2]
                cols.append(v.reshape(N, C, S))
    p = jnp.stack(cols, axis=2)          # [N, C, 27, S]
    return p.reshape(N, C * 27, S)       # [N, K, S]  (S lane-dense)


def _pick_s_tile(S, K, C_out):
    # Largest tile (multiple of 128, divides S) whose double-buffered bf16 streams
    # (patches + y) stay well under the default scoped-VMEM limit.
    if S % 128 != 0:
        return S
    budget = 12 * 1024 * 1024
    for cand in (16384, 8192, 4096, 2048, 1024, 512, 256, 128):
        if S % cand == 0 and 2 * cand * 2 * (K + C_out) <= budget:
            return cand
    return 128


def _conv_stats_kernel(p_ref, w_ref, y_ref, sum_ref, sq_ref):
    # p_ref  : (1, K, St)      bf16  im2col patch tile (S on lanes)
    # w_ref  : (C_out, K)      bf16  conv weight matrix (resident across grid)
    # y_ref  : (1, C_out, St)  bf16  un-normalized conv output (lane-dense store)
    # sum_ref: (1, C_out, 1)   f32   per-channel running sum    (resident over t)
    # sq_ref : (1, C_out, 1)   f32   per-channel running sum-sq (resident over t)
    @pl.when(pl.program_id(1) == 0)
    def _():
        sum_ref[...] = jnp.zeros_like(sum_ref)
        sq_ref[...] = jnp.zeros_like(sq_ref)

    y = jnp.dot(w_ref[...], p_ref[0], preferred_element_type=jnp.float32)
    sum_ref[0] += jnp.sum(y, axis=-1, keepdims=True)
    sq_ref[0] += jnp.sum(y * y, axis=-1, keepdims=True)
    y_ref[0] = y.astype(y_ref.dtype)


def _norm_relu_kernel(y_ref, sum_ref, sq_ref, o_ref, *, inv_s):
    # y_ref: (1, C_out, St) bf16 ; sum_ref / sq_ref: (1, C_out, 1) f32
    mean = sum_ref[0] * inv_s                                  # (C_out, 1)
    var = jnp.maximum(sq_ref[0] * inv_s - mean * mean, 0.0)    # biased variance
    rstd = jax.lax.rsqrt(var + EPS)
    y = y_ref[0].astype(jnp.float32)
    o_ref[0] = jnp.maximum((y - mean) * rstd, 0.0).astype(o_ref.dtype)


def down_conv_forward(x, weight, *, s_tile=None):
    # x: [N, C_in, D, H, W]; weight: [C_out, C_in, 3, 3, 3] (no bias in down_conv)
    N, C_in, D, H, W = x.shape
    C_out = weight.shape[0]
    Do = (D - 1) // 2 + 1
    Ho = (H - 1) // 2 + 1
    Wo = (W - 1) // 2 + 1
    S = Do * Ho * Wo
    K = C_in * 27

    if s_tile is None:
        s_tile = _pick_s_tile(S, K, C_out)
    assert S % s_tile == 0, (S, s_tile)
    T = S // s_tile

    # bf16 for the dominant DMA/MXU stream; f32 accumulation everywhere else.
    patches = _im2col_stride2(x.astype(jnp.bfloat16), Do, Ho, Wo)   # [N, K, S]
    w2 = weight.reshape(C_out, K).astype(jnp.bfloat16)              # [C_out, K]

    # Pass 1: conv as matmul per (n, S-tile) + per-channel sum / sum-of-squares.
    y, ssum, ssq = pl.pallas_call(
        _conv_stats_kernel,
        out_shape=(
            jax.ShapeDtypeStruct((N, C_out, S), jnp.bfloat16),
            jax.ShapeDtypeStruct((N, C_out, 1), jnp.float32),
            jax.ShapeDtypeStruct((N, C_out, 1), jnp.float32),
        ),
        grid=(N, T),
        in_specs=[
            pl.BlockSpec((1, K, s_tile), lambda n, t: (n, 0, t)),
            pl.BlockSpec((C_out, K), lambda n, t: (0, 0)),
        ],
        out_specs=[
            pl.BlockSpec((1, C_out, s_tile), lambda n, t: (n, 0, t)),
            pl.BlockSpec((1, C_out, 1), lambda n, t: (n, 0, 0)),
            pl.BlockSpec((1, C_out, 1), lambda n, t: (n, 0, 0)),
        ],
        compiler_params=pltpu.CompilerParams(
            dimension_semantics=("parallel", "arbitrary")),
    )(patches, w2)

    # Pass 2: finalize mean/rstd in-kernel, normalize + ReLU over lane-dense tiles.
    out = pl.pallas_call(
        functools.partial(_norm_relu_kernel, inv_s=1.0 / float(S)),
        out_shape=jax.ShapeDtypeStruct((N, C_out, S), x.dtype),
        grid=(N, T),
        in_specs=[
            pl.BlockSpec((1, C_out, s_tile), lambda n, t: (n, 0, t)),
            pl.BlockSpec((1, C_out, 1), lambda n, t: (n, 0, 0)),
            pl.BlockSpec((1, C_out, 1), lambda n, t: (n, 0, 0)),
        ],
        out_specs=pl.BlockSpec((1, C_out, s_tile), lambda n, t: (n, 0, t)),
        compiler_params=pltpu.CompilerParams(
            dimension_semantics=("parallel", "parallel")),
    )(y, ssum, ssq)

    # [N, C_out, S] -> [N, C_out, Do, Ho, Wo]  (free reshape, no transpose)
    return out.reshape(N, C_out, Do, Ho, Wo)


def _reference(x, weight):
    # pure-JAX f32 reference: strided conv -> InstanceNorm (biased var) -> ReLU
    y = jax.lax.conv_general_dilated(
        x, weight, window_strides=(2, 2, 2),
        padding=((1, 1), (1, 1), (1, 1)),
        dimension_numbers=('NCDHW', 'OIDHW', 'NCDHW'))
    mean = jnp.mean(y, axis=(2, 3, 4), keepdims=True)
    var = jnp.mean((y - mean) ** 2, axis=(2, 3, 4), keepdims=True)
    yn = (y - mean) * jax.lax.rsqrt(var + EPS)
    return jnp.maximum(yn, 0.0)


if __name__ == "__main__":
    key = jax.random.PRNGKey(0)
    kx, kw = jax.random.split(key, 2)

    N, C_in, C_out = 2, 4, 8
    D = H = W = 16          # output spatial 8x8x8 -> S = 512

    x = jax.random.normal(kx, (N, C_in, D, H, W), jnp.float32)
    weight = jax.random.normal(kw, (C_out, C_in, 3, 3, 3), jnp.float32) * 0.1

    fwd = jax.jit(down_conv_forward, static_argnames=("s_tile",))
    # s_tile=128 so the multi-tile InstanceNorm accumulation path is exercised at
    # this toy size; realistic volumes auto-select 2048-16384.
    out = fwd(x, weight, s_tile=128)
    out = jax.block_until_ready(out)

    assert out.shape == (N, C_out, 8, 8, 8)
    ref = _reference(x, weight)
    assert jnp.allclose(out, ref, atol=5e-2, rtol=5e-2), \
        float(jnp.max(jnp.abs(out - ref)))
    print("KERNEL_OK")
</pallas_src>

<mosaic_0001>
module attributes {stable_mosaic.version = 11 : i64} {
  func.func @_conv_stats_kernel(%arg0: i32, %arg1: i32, %arg2: memref<1x108x128xbf16, #tpu.memory_space<vmem>>, %arg3: memref<8x108xbf16, #tpu.memory_space<vmem>>, %arg4: memref<1x8x128xbf16, #tpu.memory_space<vmem>>, %arg5: memref<1x8x1xf32, #tpu.memory_space<vmem>>, %arg6: memref<1x8x1xf32, #tpu.memory_space<vmem>>) attributes {dimension_semantics = [#tpu.dimension_semantics<parallel>, #tpu.dimension_semantics<arbitrary>], iteration_bounds = array<i64: 2, 4>, scalar_prefetch = 0 : i64, scratch_operands = 0 : i64, tpu.core_type = #tpu.core_type<tc>, window_params = [{transform_indices = @transform_0, window_bounds = array<i64: 1, 108, 128>}, {pipeline_mode = #tpu.pipeline_mode<synchronous>, transform_indices = @transform_1, window_bounds = array<i64: 8, 108>}, {transform_indices = @transform_2, window_bounds = array<i64: 1, 8, 128>}, {transform_indices = @transform_3, window_bounds = array<i64: 1, 8, 1>}, {transform_indices = @transform_4, window_bounds = array<i64: 1, 8, 1>}]} {
    %c0_i32 = arith.constant 0 : i32
    %0 = arith.cmpi eq, %arg1, %c0_i32 : i32
    %1 = arith.extui %0 : i1 to i32
    %c0_i32_0 = arith.constant 0 : i32
    %2 = arith.cmpi ne, %1, %c0_i32_0 : i32
    scf.if %2 {
      %cst_22 = arith.constant 0.000000e+00 : f32
      %28 = vector.broadcast %cst_22 : f32 to vector<1x8x1xf32>
      %c0_23 = arith.constant 0 : index
      %c0_24 = arith.constant 0 : index
      %c0_25 = arith.constant 0 : index
      %29 = vector.load %arg5[%c0_23, %c0_24, %c0_25] : memref<1x8x1xf32, #tpu.memory_space<vmem>>, vector<1x8x1xf32>
      tpu.vector_store %arg5[%c0_23, %c0_24, %c0_25], %28 {strides = array<i32>} : memref<1x8x1xf32, #tpu.memory_space<vmem>>, vector<1x8x1xf32>,
      %cst_26 = arith.constant 0.000000e+00 : f32
      %30 = vector.broadcast %cst_26 : f32 to vector<1x8x1xf32>
      %c0_27 = arith.constant 0 : index
      %c0_28 = arith.constant 0 : index
      %c0_29 = arith.constant 0 : index
      %31 = vector.load %arg6[%c0_27, %c0_28, %c0_29] : memref<1x8x1xf32, #tpu.memory_space<vmem>>, vector<1x8x1xf32>
      tpu.vector_store %arg6[%c0_27, %c0_28, %c0_29], %30 {strides = array<i32>} : memref<1x8x1xf32, #tpu.memory_space<vmem>>, vector<1x8x1xf32>,
    } else {
    }
    %c0 = arith.constant 0 : index
    %c0_1 = arith.constant 0 : index
    %3 = vector.load %arg3[%c0, %c0_1] : memref<8x108xbf16, #tpu.memory_space<vmem>>, vector<8x108xbf16>
    %c0_2 = arith.constant 0 : index
    %c0_3 = arith.constant 0 : index
    %c0_4 = arith.constant 0 : index
    %4 = vector.load %arg2[%c0_2, %c0_3, %c0_4] : memref<1x108x128xbf16, #tpu.memory_space<vmem>>, vector<1x108x128xbf16>
    %5 = vector.shape_cast %4 : vector<1x108x128xbf16> to vector<108x128xbf16>
    %cst = arith.constant dense<0.000000e+00> : vector<8x128xf32>
    %6 = tpu.matmul %3, %5, %cst {dimension_numbers = #tpu.dot_dimension_numbers<[1], [0], [0], [1], [0, 0, 1, 1], [], []>} : vector<8x108xbf16>, vector<108x128xbf16>, vector<8x128xf32> -> vector<8x128xf32>
    %c0_5 = arith.constant 0 : index
    %c0_6 = arith.constant 0 : index
    %c0_7 = arith.constant 0 : index
    %7 = vector.load %arg5[%c0_5, %c0_6, %c0_7] : memref<1x8x1xf32, #tpu.memory_space<vmem>>, vector<1x8x1xf32>
    %8 = vector.shape_cast %7 : vector<1x8x1xf32> to vector<8x1xf32>
    %cst_8 = arith.constant dense<0.000000e+00> : vector<8xf32>
    %9 = vector.multi_reduction <add>, %6, %cst_8 [1] : vector<8x128xf32> to vector<8xf32>
    %10 = vector.shape_cast %9 : vector<8xf32> to vector<8x1xf32>
    %11 = arith.addf %8, %10 : vector<8x1xf32>
    %c0_9 = arith.constant 0 : index
    %c0_10 = arith.constant 0 : index
    %c0_11 = arith.constant 0 : index
    %12 = vector.load %arg5[%c0_9, %c0_10, %c0_11] : memref<1x8x1xf32, #tpu.memory_space<vmem>>, vector<1x8x1xf32>
    %13 = vector.shape_cast %12 : vector<1x8x1xf32> to vector<8x1xf32>
    %14 = vector.shape_cast %11 : vector<8x1xf32> to vector<1x8x1xf32>
    tpu.vector_store %arg5[%c0_9, %c0_10, %c0_11], %14 {strides = array<i32>} : memref<1x8x1xf32, #tpu.memory_space<vmem>>, vector<1x8x1xf32>,
    %c0_12 = arith.constant 0 : index
    %c0_13 = arith.constant 0 : index
    %c0_14 = arith.constant 0 : index
    %15 = vector.load %arg6[%c0_12, %c0_13, %c0_14] : memref<1x8x1xf32, #tpu.memory_space<vmem>>, vector<1x8x1xf32>
    %16 = vector.shape_cast %15 : vector<1x8x1xf32> to vector<8x1xf32>
    %17 = arith.mulf %6, %6 : vector<8x128xf32>
    %cst_15 = arith.constant dense<0.000000e+00> : vector<8xf32>
    %18 = vector.multi_reduction <add>, %17, %cst_15 [1] : vector<8x128xf32> to vector<8xf32>
    %19 = vector.shape_cast %18 : vector<8xf32> to vector<8x1xf32>
    %20 = arith.addf %16, %19 : vector<8x1xf32>
    %c0_16 = arith.constant 0 : index
    %c0_17 = arith.constant 0 : index
    %c0_18 = arith.constant 0 : index
    %21 = vector.load %arg6[%c0_16, %c0_17, %c0_18] : memref<1x8x1xf32, #tpu.memory_space<vmem>>, vector<1x8x1xf32>
    %22 = vector.shape_cast %21 : vector<1x8x1xf32> to vector<8x1xf32>
    %23 = vector.shape_cast %20 : vector<8x1xf32> to vector<1x8x1xf32>
    tpu.vector_store %arg6[%c0_16, %c0_17, %c0_18], %23 {strides = array<i32>} : memref<1x8x1xf32, #tpu.memory_space<vmem>>, vector<1x8x1xf32>,
    %24 = arith.truncf %6 : vector<8x128xf32> to vector<8x128xbf16>
    %c0_19 = arith.constant 0 : index
    %c0_20 = arith.constant 0 : index
    %c0_21 = arith.constant 0 : index
    %25 = vector.load %arg4[%c0_19, %c0_20, %c0_21] : memref<1x8x128xbf16, #tpu.memory_space<vmem>>, vector<1x8x128xbf16>
    %26 = vector.shape_cast %25 : vector<1x8x128xbf16> to vector<8x128xbf16>
    %27 = vector.shape_cast %24 : vector<8x128xbf16> to vector<1x8x128xbf16>
    tpu.vector_store %arg4[%c0_19, %c0_20, %c0_21], %27 {strides = array<i32>} : memref<1x8x128xbf16, #tpu.memory_space<vmem>>, vector<1x8x128xbf16>,
    return
  }
  func.func @transform_0(%arg0: i32, %arg1: i32) -> (i32, i32, i32) {
    %c0_i32 = arith.constant 0 : i32
    %c0_i32_0 = arith.constant 0 : i32
    return %arg0, %c0_i32, %arg1 : i32, i32, i32
  }
  func.func @transform_1(%arg0: i32, %arg1: i32) -> (i32, i32) {
    %c0_i32 = arith.constant 0 : i32
    %c0_i32_0 = arith.constant 0 : i32
    %c0_i32_1 = arith.constant 0 : i32
    return %c0_i32, %c0_i32_0 : i32, i32
  }
  func.func @transform_2(%arg0: i32, %arg1: i32) -> (i32, i32, i32) {
    %c0_i32 = arith.constant 0 : i32
    %c0_i32_0 = arith.constant 0 : i32
    return %arg0, %c0_i32, %arg1 : i32, i32, i32
  }
  func.func @transform_3(%arg0: i32, %arg1: i32) -> (i32, i32, i32) {
    %c0_i32 = arith.constant 0 : i32
    %c0_i32_0 = arith.constant 0 : i32
    %c0_i32_1 = arith.constant 0 : i32
    return %arg0, %c0_i32, %c0_i32_0 : i32, i32, i32
  }
  func.func @transform_4(%arg0: i32, %arg1: i32) -> (i32, i32, i32) {
    %c0_i32 = arith.constant 0 : i32
    %c0_i32_0 = arith.constant 0 : i32
    %c0_i32_1 = arith.constant 0 : i32
    return %arg0, %c0_i32, %c0_i32_0 : i32, i32, i32
  }
}

module attributes {stable_mosaic.version = 11 : i64} {
  func.func @_norm_relu_kernel(%arg0: i32, %arg1: i32, %arg2: memref<1x8x128xbf16, #tpu.memory_space<vmem>>, %arg3: memref<1x8x1xf32, #tpu.memory_space<vmem>>, %arg4: memref<1x8x1xf32, #tpu.memory_space<vmem>>, %arg5: memref<1x8x128xf32, #tpu.memory_space<vmem>>) attributes {dimension_semantics = [#tpu.dimension_semantics<parallel>, #tpu.dimension_semantics<parallel>], iteration_bounds = array<i64: 2, 4>, scalar_prefetch = 0 : i64, scratch_operands = 0 : i64, tpu.core_type = #tpu.core_type<tc>, window_params = [{transform_indices = @transform_0, window_bounds = array<i64: 1, 8, 128>}, {transform_indices = @transform_1, window_bounds = array<i64: 1, 8, 1>}, {transform_indices = @transform_2, window_bounds = array<i64: 1, 8, 1>}, {transform_indices = @transform_3, window_bounds = array<i64: 1, 8, 128>}]} {
    %c0 = arith.constant 0 : index
    %c0_0 = arith.constant 0 : index
    %c0_1 = arith.constant 0 : index
    %0 = vector.load %arg3[%c0, %c0_0, %c0_1] : memref<1x8x1xf32, #tpu.memory_space<vmem>>, vector<1x8x1xf32>
    %1 = vector.shape_cast %0 : vector<1x8x1xf32> to vector<8x1xf32>
    %cst = arith.constant 0.001953125 : f32
    %2 = vector.broadcast %cst : f32 to vector<8x1xf32>
    %3 = arith.mulf %1, %2 : vector<8x1xf32>
    %c0_2 = arith.constant 0 : index
    %c0_3 = arith.constant 0 : index
    %c0_4 = arith.constant 0 : index
    %4 = vector.load %arg4[%c0_2, %c0_3, %c0_4] : memref<1x8x1xf32, #tpu.memory_space<vmem>>, vector<1x8x1xf32>
    %5 = vector.shape_cast %4 : vector<1x8x1xf32> to vector<8x1xf32>
    %cst_5 = arith.constant 0.001953125 : f32
    %6 = vector.broadcast %cst_5 : f32 to vector<8x1xf32>
    %7 = arith.mulf %5, %6 : vector<8x1xf32>
    %8 = arith.mulf %3, %3 : vector<8x1xf32>
    %9 = arith.subf %7, %8 : vector<8x1xf32>
    %cst_6 = arith.constant 0.000000e+00 : f32
    %10 = vector.broadcast %cst_6 : f32 to vector<8x1xf32>
    %11 = arith.maximumf %9, %10 : vector<8x1xf32>
    %cst_7 = arith.constant 9.99999974E-6 : f32
    %12 = vector.broadcast %cst_7 : f32 to vector<8x1xf32>
    %13 = arith.addf %11, %12 : vector<8x1xf32>
    %14 = math.rsqrt %13 : vector<8x1xf32>
    %c0_8 = arith.constant 0 : index
    %c0_9 = arith.constant 0 : index
    %c0_10 = arith.constant 0 : index
    %15 = vector.load %arg2[%c0_8, %c0_9, %c0_10] : memref<1x8x128xbf16, #tpu.memory_space<vmem>>, vector<1x8x128xbf16>
    %16 = vector.shape_cast %15 : vector<1x8x128xbf16> to vector<8x128xbf16>
    %17 = arith.extf %16 : vector<8x128xbf16> to vector<8x128xf32>
    %18 = vector.broadcast %3 : vector<8x1xf32> to vector<8x128xf32>
    %19 = arith.subf %17, %18 : vector<8x128xf32>
    %20 = vector.broadcast %14 : vector<8x1xf32> to vector<8x128xf32>
    %21 = arith.mulf %19, %20 : vector<8x128xf32>
    %cst_11 = arith.constant 0.000000e+00 : f32
    %22 = vector.broadcast %cst_11 : f32 to vector<8x128xf32>
    %23 = arith.maximumf %21, %22 : vector<8x128xf32>
    %c0_12 = arith.constant 0 : index
    %c0_13 = arith.constant 0 : index
    %c0_14 = arith.constant 0 : index
    %24 = vector.load %arg5[%c0_12, %c0_13, %c0_14] : memref<1x8x128xf32, #tpu.memory_space<vmem>>, vector<1x8x128xf32>
    %25 = vector.shape_cast %24 : vector<1x8x128xf32> to vector<8x128xf32>
    %26 = vector.shape_cast %23 : vector<8x128xf32> to vector<1x8x128xf32>
    tpu.vector_store %arg5[%c0_12, %c0_13, %c0_14], %26 {strides = array<i32>} : memref<1x8x128xf32, #tpu.memory_space<vmem>>, vector<1x8x128xf32>,
    return
  }
  func.func @transform_0(%arg0: i32, %arg1: i32) -> (i32, i32, i32) {
    %c0_i32 = arith.constant 0 : i32
    %c0_i32_0 = arith.constant 0 : i32
    return %arg0, %c0_i32, %arg1 : i32, i32, i32
  }
  func.func @transform_1(%arg0: i32, %arg1: i32) -> (i32, i32, i32) {
    %c0_i32 = arith.constant 0 : i32
    %c0_i32_0 = arith.constant 0 : i32
    %c0_i32_1 = arith.constant 0 : i32
    return %arg0, %c0_i32, %c0_i32_0 : i32, i32, i32
  }
  func.func @transform_2(%arg0: i32, %arg1: i32) -> (i32, i32, i32) {
    %c0_i32 = arith.constant 0 : i32
    %c0_i32_0 = arith.constant 0 : i32
    %c0_i32_1 = arith.constant 0 : i32
    return %arg0, %c0_i32, %c0_i32_0 : i32, i32, i32
  }
  func.func @transform_3(%arg0: i32, %arg1: i32) -> (i32, i32, i32) {
    %c0_i32 = arith.constant 0 : i32
    %c0_i32_0 = arith.constant 0 : i32
    return %arg0, %c0_i32, %arg1 : i32, i32, i32
  }
}

</mosaic_0001>

<llo_original>
// kernel: down_conv_forward.3
$region0: #{down_conv_forward.3}
  #allocation0 [shape = 'u32[]', space=smem, size = 0x4, offset = 0x4, fixed_abs, tag = 'smem constant byte address 0x4 - core index']
  #allocation1 [shape = 'u32[144,128]{1,0:T(1,128)}', space=vmem, size = 0x12000, scoped, tag = 'internal scratch']
  %s0 = inlined_call_operand.vmem [shape: bf16[2,8,512], index: 0, kind: input, shape index: {}]
  %s1 = inlined_call_operand.vmem [shape: f32[2,8,1], index: 1, kind: input, shape index: {}]
  %s2 = inlined_call_operand.vmem [shape: f32[2,8,1], index: 2, kind: input, shape index: {}]
  %s3 = inlined_call_operand.vmem [shape: f32[2,8,512], index: 3, kind: output, shape index: {}]
  %s4 = sld [smem:[#allocation0]]
  $region45: #{down_conv_forward.3} parent=0
    _
  %s6 = ssub.s32 1, %s4
  %s7 = scalar_select 0, %s6, %s4
  loop: start=0, step=1, limit=10
  $region2: #{down_conv_forward.3} parent=0 // loop_pre_header
    _
  $region3: #{down_conv_forward.3} parent=0 // loop_header
    %s9 = sphi 0, %s13
    %p10 = scmp.ge.s32.totalorder %s9, 10
    %s16 = sphi 0, %s28
    %s17 = sphi 0, %s24
    %s18 = sphi 0, %s16
    %s19 = sphi 0, %s17
    %s20 = sphi 0, %s18
    %s21 = sphi 0, %s19
    %s33 = sphi 0, %s35
    %s36 = sphi 0, %s33
    %s37 = sphi 0, %s36
    %s53 = sphi 0, %s37
    %s59 = sphi 0, %s61
    %s62 = sphi 0, %s59
    %s63 = sphi 0, %s62
    %s79 = sphi 0, %s63
    %s85 = sphi 0, %s87
    %s88 = sphi 0, %s85
    %s89 = sphi 0, %s88
    %s105 = sphi 0, %s89
    %s113 = sphi 0, %s115
    %s116 = sphi 0, %s113
    %s117 = sphi 0, %s116
    %s133 = sphi 0, %s117
  $region4: #{down_conv_forward.3} parent=0 // loop_header_branch
    %12 = sbr.rel (%p10) target = $region8
  $region5: #{down_conv_forward.3} parent=0 // loop_body
    %s14 = ssub.s32 %s9, 1
    %s15 = ssub.s32 %s9, 2
    %s22 = sadd.s32 1, %s17
    %p23 = scmp.ge.s32.totalorder %s22, 4
    %s24 = scalar_select %p23, 0, %s22
    %s25 = sadd.s32 1, %s16
    %s26 = scalar_select %p23, %s25, %s16
    %p27 = scmp.ge.s32.totalorder %s26, 2
    %s28 = scalar_select %p27, 0, %s26
    %s29 = ssub.s32 %s16, %s28
    %s30 = ssub.s32 %s17, %s24
    %s31 = sor.u32 %s29, %s30
    %p32 = scmp.eq.s32.totalorder %s31, 0
    %s34 = sadd.s32 %s33, 1
    %s35 = scalar_select %p32, %s33, %s34
    %p38 = pneg %p32
    %p39 = scmp.eq.s32.totalorder %s9, 7
    %p40 = por %p38, %p39
    %p41 = scmp.ne.s32.totalorder %s33, %s36
    %p42 = scmp.eq.s32.totalorder %s9, 0
    %p43 = por %p41, %p42
    %p44 = scmp.ne.s32.totalorder %s33, %s36
    %p45 = scmp.eq.s32.totalorder %s14, 7
    %p46 = por %p44, %p45
    %p47 = scmp.ne.s32.totalorder %s36, %s37
    %p48 = scmp.eq.s32.totalorder %s14, 0
    %p49 = por %p47, %p48
    %p50 = scmp.ne.s32.totalorder %s36, %s37
    %p51 = scmp.eq.s32.totalorder %s15, 7
    %p52 = por %p50, %p51
    %p54 = scmp.ne.s32.totalorder %s37, %s53
    %p55 = scmp.eq.s32.totalorder %s15, 0
    %p56 = por %p54, %p55
    %s57 = ssub.s32 %s16, %s28
    %p58 = scmp.eq.s32.totalorder %s57, 0
    %s60 = sadd.s32 %s59, 1
    %s61 = scalar_select %p58, %s59, %s60
    %p64 = pneg %p58
    %p65 = scmp.eq.s32.totalorder %s9, 7
    %p66 = por %p64, %p65
    %p67 = scmp.ne.s32.totalorder %s59, %s62
    %p68 = scmp.eq.s32.totalorder %s9, 0
    %p69 = por %p67, %p68
    %p70 = scmp.ne.s32.totalorder %s59, %s62
    %p71 = scmp.eq.s32.totalorder %s14, 7
    %p72 = por %p70, %p71
    %p73 = scmp.ne.s32.totalorder %s62, %s63
    %p74 = scmp.eq.s32.totalorder %s14, 0
    %p75 = por %p73, %p74
    %p76 = scmp.ne.s32.totalorder %s62, %s63
    %p77 = scmp.eq.s32.totalorder %s15, 7
    %p78 = por %p76, %p77
    %p80 = scmp.ne.s32.totalorder %s63, %s79
    %p81 = scmp.eq.s32.totalorder %s15, 0
    %p82 = por %p80, %p81
    %s83 = ssub.s32 %s16, %s28
    %p84 = scmp.eq.s32.totalorder %s83, 0
    %s86 = sadd.s32 %s85, 1
    %s87 = scalar_select %p84, %s85, %s86
    %p90 = pneg %p84
    %p91 = scmp.eq.s32.totalorder %s9, 7
    %p92 = por %p90, %p91
    %p93 = scmp.ne.s32.totalorder %s85, %s88
    %p94 = scmp.eq.s32.totalorder %s9, 0
    %p95 = por %p93, %p94
    %p96 = scmp.ne.s32.totalorder %s85, %s88
    %p97 = scmp.eq.s32.totalorder %s14, 7
    %p98 = por %p96, %p97
    %p99 = scmp.ne.s32.totalorder %s88, %s89
    %p100 = scmp.eq.s32.totalorder %s14, 0
    %p101 = por %p99, %p100
    %p102 = scmp.ne.s32.totalorder %s88, %s89
    %p103 = scmp.eq.s32.totalorder %s15, 7
    %p104 = por %p102, %p103
    %p106 = scmp.ne.s32.totalorder %s89, %s105
    %p107 = scmp.eq.s32.totalorder %s15, 0
    %p108 = por %p106, %p107
    %s109 = ssub.s32 %s16, %s28
    %s110 = ssub.s32 %s17, %s24
    %s111 = sor.u32 %s109, %s110
    %p112 = scmp.eq.s32.totalorder %s111, 0
    %s114 = sadd.s32 %s113, 1
    %s115 = scalar_select %p112, %s113, %s114
    %p118 = pneg %p112
    %p119 = scmp.eq.s32.totalorder %s9, 7
    %p120 = por %p118, %p119
    %p121 = scmp.ne.s32.totalorder %s113, %s116
    %p122 = scmp.eq.s32.totalorder %s9, 0
    %p123 = por %p121, %p122
    %p124 = scmp.ne.s32.totalorder %s113, %s116
    %p125 = scmp.eq.s32.totalorder %s14, 7
    %p126 = por %p124, %p125
    %p127 = scmp.ne.s32.totalorder %s116, %s117
    %p128 = scmp.eq.s32.totalorder %s14, 0
    %p129 = por %p127, %p128
    %p130 = scmp.ne.s32.totalorder %s116, %s117
    %p131 = scmp.eq.s32.totalorder %s15, 7
    %p132 = por %p130, %p131
    %p134 = scmp.ne.s32.totalorder %s117, %s133
    %p135 = scmp.eq.s32.totalorder %s15, 0
    %p136 = por %p134, %p135
    %p137 = scmp.le.s32.totalorder 1, %s9
    %p138 = scmp.lt.s32.totalorder %s9, 9
    %p139 = pnand %p137, %p138
    %p140 = pneg %p139
    // Predicated region
    $region9: #{down_conv_forward.3} parent=5 // pred_check
      _
    $region10: #{down_conv_forward.3} parent=5 // pred_check_branch
      %142 = sbr.rel (%p139) target = $region12
    $region11: #{down_conv_forward.3} parent=5 // pred_region
      %s143 = ssub.s32 %s9, 1
    $region12: #{down_conv_forward.3} parent=5 // pred_fallthru
      _
    %p144 = scmp.lt.s32.totalorder %s9, 8
    // Predicated region
    $region13: #{down_conv_forward.3} parent=5 // pred_check
      %p145 = pneg %p144
    $region14: #{down_conv_forward.3} parent=5 // pred_check_branch
      %147 = sbr.rel (%p145) target = $region16
    $region15: #{down_conv_forward.3} parent=5 // pred_region
      // Predicated region
      $region17: #{down_conv_forward.3} parent=15 // pred_check
        %p148 = pneg %p43
      $region18: #{down_conv_forward.3} parent=15 // pred_check_branch
        %150 = sbr.rel (%p148) target = $region20
      $region19: #{down_conv_forward.3} parent=15 // pred_region
        %p151 = scmp.lt.s32.totalorder %s16, 1
        %s152 = scalar_select %p151, %s16, 1
        %p153 = scmp.lt.s32.totalorder %s17, 3
        %s154 = scalar_select %p153, %s17, 3
        %s155 = smul.addr %s152, 4
        %s156 = sadd.s32 %s154, %s155
        %s157 = smul.addr %s156, 4
        %s158 = scalar_lea.vmem %s0, %s157
      $region20: #{down_conv_forward.3} parent=15 // pred_fallthru
        _
      // Predicated region
      $region21: #{down_conv_forward.3} parent=15 // pred_check
        %p159 = pneg %p69
      $region22: #{down_conv_forward.3} parent=15 // pred_check_branch
        %161 = sbr.rel (%p159) target = $region24
      $region23: #{down_conv_forward.3} parent=15 // pred_region
        %p162 = scmp.lt.s32.totalorder %s16, 1
        %s163 = scalar_select %p162, %s16, 1
        %s164 = smul.addr %s163, 8
        %s165 = scalar_lea.vmem %s1, %s164
      $region24: #{down_conv_forward.3} parent=15 // pred_fallthru
        _
      // Predicated region
      $region25: #{down_conv_forward.3} parent=15 // pred_check
        %p166 = pneg %p95
      $region26: #{down_conv_forward.3} parent=15 // pred_check_branch
        %168 = sbr.rel (%p166) target = $region28
      $region27: #{down_conv_forward.3} parent=15 // pred_region
        %p169 = scmp.lt.s32.totalorder %s16, 1
        %s170 = scalar_select %p169, %s16, 1
        %s171 = smul.addr %s170, 8
        %s172 = scalar_lea.vmem %s2, %s171
      $region28: #{down_conv_forward.3} parent=15 // pred_fallthru
        _
    $region16: #{down_conv_forward.3} parent=5 // pred_fallthru
      _
    %p173 = scmp.le.s32.totalorder 1, %s9
    %p174 = scmp.lt.s32.totalorder %s9, 9
    %p175 = pnand %p173, %p174
    %p176 = pneg %p175
    // Predicated region
    $region29: #{down_conv_forward.3} parent=5 // pred_check
      _
    $region30: #{down_conv_forward.3} parent=5 // pred_check_branch
      %178 = sbr.rel (%p175) target = $region32
    $region31: #{down_conv_forward.3} parent=5 // pred_region
      %s179 = ssub.s32 %s9, 1
      %p180 = scmp.lt.s32.totalorder %s18, 1
      %s181 = scalar_select %p180, %s18, 1
      %p182 = scmp.lt.s32.totalorder %s19, 3
      %s183 = scalar_select %p182, %s19, 3
      %s184 = smul.addr %s181, 4
      %s185 = sadd.s32 %s183, %s184
      %s186 = smul.addr %s185, 4
      %s187 = scalar_lea.vmem %s0, %s186
      %p188 = pneg %p49
      %p189 = pneg %p46
      %p190 = scmp.lt.s32.totalorder %s18, 1
      %s191 = scalar_select %p190, %s18, 1
      %s192 = smul.addr %s191, 8
      %s193 = scalar_lea.vmem %s1, %s192
      %p194 = pneg %p75
      %p195 = pneg %p72
      %p196 = scmp.lt.s32.totalorder %s18, 1
      %s197 = scalar_select %p196, %s18, 1
      %s198 = smul.addr %s197, 8
      %s199 = scalar_lea.vmem %s2, %s198
      %p200 = pneg %p101
      %p201 = pneg %p98
      %p202 = pneg %p129
      %p203 = pneg %p126
      %p204 = scmp.lt.s32.totalorder %s18, 1
      %s205 = scalar_select %p204, %s18, 1
      %p206 = scmp.lt.s32.totalorder %s19, 3
      %s207 = scalar_select %p206, %s19, 3
      %s208 = smul.addr %s205, 4
      %s209 = sadd.s32 %s207, %s208
      %s210 = smul.addr %s209, 8
      %s211 = scalar_lea.vmem %s3, %s210
      %p212 = scmp.lt.s32.totalorder %s18, 1
      %s213 = scalar_select %p212, %s18, 1
      %p214 = scmp.lt.s32.totalorder %s19, 3
      %s215 = scalar_select %p214, %s19, 3
      %s216 = smul.addr %s213, 4
      %s217 = sadd.s32 %s215, %s216
      %s218 = smul.addr %s217, 4
      %s219 = scalar_lea.vmem %s0, %s218
      %p220 = scmp.lt.s32.totalorder %s18, 1
      %s221 = scalar_select %p220, %s18, 1
      %s222 = smul.addr %s221, 8
      %s223 = scalar_lea.vmem %s1, %s222
      %p224 = scmp.lt.s32.totalorder %s18, 1
      %s225 = scalar_select %p224, %s18, 1
      %s226 = smul.addr %s225, 8
      %s227 = scalar_lea.vmem %s2, %s226
      %p228 = scmp.lt.s32.totalorder %s18, 1
      %s229 = scalar_select %p228, %s18, 1
      %p230 = scmp.lt.s32.totalorder %s19, 3
      %s231 = scalar_select %p230, %s19, 3
      %s232 = smul.addr %s229, 4
      %s233 = sadd.s32 %s231, %s232
      %s234 = smul.addr %s233, 8
      %s235 = scalar_lea.vmem %s3, %s234
      %v236 = vld [vmem:[%s223] sm:$0xff]
      %v237 = vmul.f32 %v236, 0.001953125
      %v238 = vld [vmem:[%s227] sm:$0xff]
      %v239 = vmul.f32 %v238, 0.001953125
      %v240 = vmul.f32 %v237, %v237
      %v241 = vsub.f32 %v239, %v240
      %v242 = vmax.f32 %v241, 0.0
      %v243 = vadd.f32 %v242, 1e-05
      %v244 = vrsqrt.pop %v243
      %v245 = vld [vmem:[%s219] sm:$0xf]
      %v246 = vunpack.c.l.bf16 %v245
      %248 = vset.pattern.permute.xlu0 0
      %249 = vperm.xlu0 %248, %v237
      %v250 = vpop.permute.xlu0 %249
      %v252 = vsub.f32 %v246, %v250
      %254 = vset.pattern.permute.xlu0 0
      %255 = vperm.xlu0 %254, %v244
      %v256 = vpop.permute.xlu0 %255
      %v258 = vmul.f32 %v252, %v256
      %v259 = vmax.f32 %v258, 0.0
      %260 = vst [vmem:[%s235] sm:$0xff] %v259
      %p261 = scmp.lt.s32.totalorder %s18, 1
      %s262 = scalar_select %p261, %s18, 1
      %p263 = scmp.lt.s32.totalorder %s19, 3
      %s264 = scalar_select %p263, %s19, 3
      %s265 = smul.addr %s262, 4
      %s266 = sadd.s32 %s264, %s265
      %s267 = smul.addr %s266, 8
      %s268 = scalar_lea.vmem %s3, %s267
      // Predicated region
      $region33: #{down_conv_forward.3} parent=31 // pred_check
        %p269 = pneg %p126
      $region34: #{down_conv_forward.3} parent=31 // pred_check_branch
        %271 = sbr.rel (%p269) target = $region36
      $region35: #{down_conv_forward.3} parent=31 // pred_region
        _
      $region36: #{down_conv_forward.3} parent=31 // pred_fallthru
        _
    $region32: #{down_conv_forward.3} parent=5 // pred_fallthru
      _
    %p272 = scmp.le.s32.totalorder 2, %s9
    // Predicated region
    $region37: #{down_conv_forward.3} parent=5 // pred_check
      %p273 = pneg %p272
    $region38: #{down_conv_forward.3} parent=5 // pred_check_branch
      %275 = sbr.rel (%p273) target = $region40
    $region39: #{down_conv_forward.3} parent=5 // pred_region
      %s276 = ssub.s32 %s9, 2
      // Predicated region
      $region41: #{down_conv_forward.3} parent=39 // pred_check
        %p277 = pneg %p132
      $region42: #{down_conv_forward.3} parent=39 // pred_check_branch
        %279 = sbr.rel (%p277) target = $region44
      $region43: #{down_conv_forward.3} parent=39 // pred_region
        %p280 = scmp.lt.s32.totalorder %s20, 1
        %s281 = scalar_select %p280, %s20, 1
        %p282 = scmp.lt.s32.totalorder %s21, 3
        %s283 = scalar_select %p282, %s21, 3
        %s284 = smul.addr %s281, 4
        %s285 = sadd.s32 %s283, %s284
        %s286 = smul.addr %s285, 8
        %s287 = scalar_lea.vmem %s3, %s286
      $region44: #{down_conv_forward.3} parent=39 // pred_fallthru
        _
    $region40: #{down_conv_forward.3} parent=5 // pred_fallthru
      _
  $region6: #{down_conv_forward.3} parent=0 // loop_footer
    %s13 = sadd.s32 1, %s9
  $region7: #{down_conv_forward.3} parent=0 // loop_footer_branch
    %8 = sbr.rel target = $region3
  $region8: #{down_conv_forward.3} parent=0 // loop_exit
    _

// kernel: down_conv_forward.2
$region0: #{down_conv_forward.2}
  #allocation0 [shape = 'u32[]', space=smem, size = 0x4, offset = 0x4, fixed_abs, tag = 'smem constant byte address 0x4 - core index']
  #allocation1 [shape = 'u32[144,128]{1,0:T(1,128)}', space=vmem, size = 0x12000, scoped, tag = 'internal scratch']
  %s0 = inlined_call_operand.vmem [shape: bf16[2,108,512], index: 0, kind: input, shape index: {}]
  %s1 = inlined_call_operand.vmem [shape: bf16[8,108], index: 1, kind: input, shape index: {}]
  %s2 = inlined_call_operand.vmem [shape: bf16[2,8,512], index: 2, kind: output, shape index: {0}]
  %s3 = inlined_call_operand.vmem [shape: f32[2,8,1], index: 3, kind: output, shape index: {1}]
  %s4 = inlined_call_operand.vmem [shape: f32[2,8,1], index: 4, kind: output, shape index: {2}]
  %5 = xla_tuple %s2, %s3, %s4
  %s6 = sld [smem:[#allocation0]]
  $region102: #{down_conv_forward.2} parent=0
    _
  %s8 = ssub.s32 1, %s6
  %s9 = scalar_select 0, %s8, %s6
  $region1: #{down_conv_forward.2} parent=0
    #allocation2 [shape = 'u8[57344]{0}', space=vmem, size = 0xe000, scoped, tag = 'input window, operand 0']
    loop: start=0, step=1, limit=10
    $region2: #{down_conv_forward.2} parent=1 // loop_pre_header
      _
    $region3: #{down_conv_forward.2} parent=1 // loop_header
      %s11 = sphi 0, %s15
      %p12 = scmp.ge.s32.totalorder %s11, 10
      %s18 = sphi 0, %s30
      %s19 = sphi 0, %s26
      %s20 = sphi 0, %s18
      %s21 = sphi 0, %s19
      %s22 = sphi 0, %s20
      %s23 = sphi 0, %s21
      %s35 = sphi 0, %s37
      %s38 = sphi 0, %s35
      %s39 = sphi 0, %s38
      %s55 = sphi 0, %s39
      %s59 = sphi 0, %s59
      %s61 = sphi 0, %s59
      %s62 = sphi 0, %s61
      %s76 = sphi 0, %s62
      %s84 = sphi 0, %s86
      %s87 = sphi 0, %s84
      %s88 = sphi 0, %s87
      %s104 = sphi 0, %s88
      %s110 = sphi 0, %s112
      %s113 = sphi 0, %s110
      %s114 = sphi 0, %s113
      %s130 = sphi 0, %s114
      %s136 = sphi 0, %s138
      %s139 = sphi 0, %s136
      %s140 = sphi 0, %s139
      %s156 = sphi 0, %s140
    $region4: #{down_conv_forward.2} parent=1 // loop_header_branch
      %14 = sbr.rel (%p12) target = $region8
    $region5: #{down_conv_forward.2} parent=1 // loop_body
      %s16 = ssub.s32 %s11, 1
      %s17 = ssub.s32 %s11, 2
      %s24 = sadd.s32 1, %s19
      %p25 = scmp.ge.s32.totalorder %s24, 4
      %s26 = scalar_select %p25, 0, %s24
      %s27 = sadd.s32 1, %s18
      %s28 = scalar_select %p25, %s27, %s18
      %p29 = scmp.ge.s32.totalorder %s28, 2
      %s30 = scalar_select %p29, 0, %s28
      %s31 = ssub.s32 %s18, %s30
      %s32 = ssub.s32 %s19, %s26
      %s33 = sor.u32 %s31, %s32
      %p34 = scmp.eq.s32.totalorder %s33, 0
      %s36 = sadd.s32 %s35, 1
      %s37 = scalar_select %p34, %s35, %s36
      %p40 = pneg %p34
      %p41 = scmp.eq.s32.totalorder %s11, 7
      %p42 = por %p40, %p41
      %p43 = scmp.ne.s32.totalorder %s35, %s38
      %p44 = scmp.eq.s32.totalorder %s11, 0
      %p45 = por %p43, %p44
      %p46 = scmp.ne.s32.totalorder %s35, %s38
      %p47 = scmp.eq.s32.totalorder %s16, 7
      %p48 = por %p46, %p47
      %p49 = scmp.ne.s32.totalorder %s38, %s39
      %p50 = scmp.eq.s32.totalorder %s16, 0
      %p51 = por %p49, %p50
      %p52 = scmp.ne.s32.totalorder %s38, %s39
      %p53 = scmp.eq.s32.totalorder %s17, 7
      %p54 = por %p52, %p53
      %p56 = scmp.ne.s32.totalorder %s39, %s55
      %p57 = scmp.eq.s32.totalorder %s17, 0
      %p58 = por %p56, %p57
      %s60 = sadd.s32 %s59, 1
      %p63 = scmp.eq.s32.totalorder %s11, 7
      %p64 = scmp.ne.s32.totalorder %s59, %s61
      %p65 = scmp.eq.s32.totalorder %s11, 0
      %p66 = por %p64, %p65
      %p67 = scmp.ne.s32.totalorder %s59, %s61
      %p68 = scmp.eq.s32.totalorder %s16, 7
      %p69 = por %p67, %p68
      %p70 = scmp.ne.s32.totalorder %s61, %s62
      %p71 = scmp.eq.s32.totalorder %s16, 0
      %p72 = por %p70, %p71
      %p73 = scmp.ne.s32.totalorder %s61, %s62
      %p74 = scmp.eq.s32.totalorder %s17, 7
      %p75 = por %p73, %p74
      %p77 = scmp.ne.s32.totalorder %s62, %s76
      %p78 = scmp.eq.s32.totalorder %s17, 0
      %p79 = por %p77, %p78
      %s80 = ssub.s32 %s18, %s30
      %s81 = ssub.s32 %s19, %s26
      %s82 = sor.u32 %s80, %s81
      %p83 = scmp.eq.s32.totalorder %s82, 0
      %s85 = sadd.s32 %s84, 1
      %s86 = scalar_select %p83, %s84, %s85
      %p89 = pneg %p83
      %p90 = scmp.eq.s32.totalorder %s11, 7
      %p91 = por %p89, %p90
      %p92 = scmp.ne.s32.totalorder %s84, %s87
      %p93 = scmp.eq.s32.totalorder %s11, 0
      %p94 = por %p92, %p93
      %p95 = scmp.ne.s32.totalorder %s84, %s87
      %p96 = scmp.eq.s32.totalorder %s16, 7
      %p97 = por %p95, %p96
      %p98 = scmp.ne.s32.totalorder %s87, %s88
      %p99 = scmp.eq.s32.totalorder %s16, 0
      %p100 = por %p98, %p99
      %p101 = scmp.ne.s32.totalorder %s87, %s88
      %p102 = scmp.eq.s32.totalorder %s17, 7
      %p103 = por %p101, %p102
      %p105 = scmp.ne.s32.totalorder %s88, %s104
      %p106 = scmp.eq.s32.totalorder %s17, 0
      %p107 = por %p105, %p106
      %s108 = ssub.s32 %s18, %s30
      %p109 = scmp.eq.s32.totalorder %s108, 0
      %s111 = sadd.s32 %s110, 1
      %s112 = scalar_select %p109, %s110, %s111
      %p115 = pneg %p109
      %p116 = scmp.eq.s32.totalorder %s11, 7
      %p117 = por %p115, %p116
      %p118 = scmp.ne.s32.totalorder %s110, %s113
      %p119 = scmp.eq.s32.totalorder %s11, 0
      %p120 = por %p118, %p119
      %p121 = scmp.ne.s32.totalorder %s110, %s113
      %p122 = scmp.eq.s32.totalorder %s16, 7
      %p123 = por %p121, %p122
      %p124 = scmp.ne.s32.totalorder %s113, %s114
      %p125 = scmp.eq.s32.totalorder %s16, 0
      %p126 = por %p124, %p125
      %p127 = scmp.ne.s32.totalorder %s113, %s114
      %p128 = scmp.eq.s32.totalorder %s17, 7
      %p129 = por %p127, %p128
      %p131 = scmp.ne.s32.totalorder %s114, %s130
      %p132 = scmp.eq.s32.totalorder %s17, 0
      %p133 = por %p131, %p132
      %s134 = ssub.s32 %s18, %s30
      %p135 = scmp.eq.s32.totalorder %s134, 0
      %s137 = sadd.s32 %s136, 1
      %s138 = scalar_select %p135, %s136, %s137
      %p141 = pneg %p135
      %p142 = scmp.eq.s32.totalorder %s11, 7
      %p143 = por %p141, %p142
      %p144 = scmp.ne.s32.totalorder %s136, %s139
      %p145 = scmp.eq.s32.totalorder %s11, 0
      %p146 = por %p144, %p145
      %p147 = scmp.ne.s32.totalorder %s136, %s139
      %p148 = scmp.eq.s32.totalorder %s16, 7
      %p149 = por %p147, %p148
      %p150 = scmp.ne.s32.totalorder %s139, %s140
      %p151 = scmp.eq.s32.totalorder %s16, 0
      %p152 = por %p150, %p151
      %p153 = scmp.ne.s32.totalorder %s139, %s140
      %p154 = scmp.eq.s32.totalorder %s17, 7
      %p155 = por %p153, %p154
      %p157 = scmp.ne.s32.totalorder %s140, %s156
      %p158 = scmp.eq.s32.totalorder %s17, 0
      %p159 = por %p157, %p158
      %p160 = scmp.le.s32.totalorder 1, %s11
      %p161 = scmp.lt.s32.totalorder %s11, 9
      %p162 = pnand %p160, %p161
      %p163 = pneg %p162
      // Predicated region
      $region9: #{down_conv_forward.2} parent=5 // pred_check
        _
      $region10: #{down_conv_forward.2} parent=5 // pred_check_branch
        %165 = sbr.rel (%p162) target = $region12
      $region11: #{down_conv_forward.2} parent=5 // pred_region
        %s166 = ssub.s32 %s11, 1
        // Predicated region
        $region13: #{down_conv_forward.2} parent=11 // pred_check
          %p167 = pneg %p72
        $region14: #{down_conv_forward.2} parent=11 // pred_check_branch
          %169 = sbr.rel (%p167) target = $region16
        $region15: #{down_conv_forward.2} parent=11 // pred_region
          _
        $region16: #{down_conv_forward.2} parent=11 // pred_fallthru
          _
      $region12: #{down_conv_forward.2} parent=5 // pred_fallthru
        _
      %p170 = scmp.lt.s32.totalorder %s11, 8
      // Predicated region
      $region17: #{down_conv_forward.2} parent=5 // pred_check
        %p171 = pneg %p170
      $region18: #{down_conv_forward.2} parent=5 // pred_check_branch
        %173 = sbr.rel (%p171) target = $region20
      $region19: #{down_conv_forward.2} parent=5 // pred_region
        // Predicated region
        $region21: #{down_conv_forward.2} parent=19 // pred_check
          %p174 = pneg %p45
        $region22: #{down_conv_forward.2} parent=19 // pred_check_branch
          %176 = sbr.rel (%p174) target = $region24
        $region23: #{down_conv_forward.2} parent=19 // pred_region
          %s177 = sand.u32 %s35, 1
          %s178 = sand.u32 %s35, 1
          %s179 = smul.addr %s178, 56
          %s180 = scalar_lea.vmem [#allocation2], %s179
          %s181 = smul.addr %s18, 56
          %s182 = sadd.s32 %s19, %s181
          %s183 = smul.addr %s182, 4
          %s184 = scalar_lea.vmem %s0, %s183
          // Predicated region
          $region25: #{down_conv_forward.2} parent=23 // pred_check
            _
          $region26: #{down_conv_forward.2} parent=23 // pred_check_branch
            %186 = sbr.rel (0) target = $region28
          $region27: #{down_conv_forward.2} parent=23 // pred_region
            // Predicated region
            $region29: #{down_conv_forward.2} parent=27 // pred_check
              _
            $region30: #{down_conv_forward.2} parent=27 // pred_check_branch
              %188 = sbr.rel target = $region32
            $region31: #{down_conv_forward.2} parent=27 // pred_region
              // Predicated region
              $region44: #{down_conv_forward.2} parent=31 // pred_check
                _
              $region45: #{down_conv_forward.2} parent=31 // pred_check_branch
                %229 = sbr.rel (0) target = $region47
              $region46: #{down_conv_forward.2} parent=31 // pred_region
                loop: start=0, step=1, limit=1
                $region48: #{down_conv_forward.2} parent=46 // loop_pre_header
                  _
                $region49: #{down_conv_forward.2} parent=46 // loop_header
                  %s231 = sphi 0, %s235
                  %p232 = scmp.ge.s32.totalorder %s231, 1
                  %s236 = sphi %s184, %s184
                  %s237 = sphi %s180, %s180
                $region50: #{down_conv_forward.2} parent=46 // loop_header_branch
                  %234 = sbr.rel (%p232) target = $region54
                $region51: #{down_conv_forward.2} parent=46 // loop_body
                  _
                $region52: #{down_conv_forward.2} parent=46 // loop_footer
                  %s235 = sadd.s32 1, %s231
                $region53: #{down_conv_forward.2} parent=46 // loop_footer_branch
                  %230 = sbr.rel target = $region49
                $region54: #{down_conv_forward.2} parent=46 // loop_exit
                  _
                loop: start=0, step=1, limit=1
                $region55: #{down_conv_forward.2} parent=46 // loop_pre_header
                  _
                $region56: #{down_conv_forward.2} parent=46 // loop_header
                  %s240 = sphi 0, %s244
                  %p241 = scmp.ge.s32.totalorder %s240, 1
                  %s245 = sphi %s184, %s184
                  %s246 = sphi %s180, %s180
                $region57: #{down_conv_forward.2} parent=46 // loop_header_branch
                  %243 = sbr.rel (%p241) target = $region61
                $region58: #{down_conv_forward.2} parent=46 // loop_body
                  %v247 = vld [vmem:[%s245] sm:$0xf]
                  %248 = vst [vmem:[%s246] sm:$0xf] %v247
                  %v249 = vld [vmem:[%s245 + $0x10] sm:$0xf]
                  %250 = vst [vmem:[%s246 + $0x4] sm:$0xf] %v249
                  %v251 = vld [vmem:[%s245 + $0x20] sm:$0xf]
                  %252 = vst [vmem:[%s246 + $0x8] sm:$0xf] %v251
                  %v253 = vld [vmem:[%s245 + $0x30] sm:$0xf]
                  %254 = vst [vmem:[%s246 + $0xc] sm:$0xf] %v253
                  %v255 = vld [vmem:[%s245 + $0x40] sm:$0xf]
                  %256 = vst [vmem:[%s246 + $0x10] sm:$0xf] %v255
                  %v257 = vld [vmem:[%s245 + $0x50] sm:$0xf]
                  %258 = vst [vmem:[%s246 + $0x14] sm:$0xf] %v257
                  %v259 = vld [vmem:[%s245 + $0x60] sm:$0xf]
                  %260 = vst [vmem:[%s246 + $0x18] sm:$0xf] %v259
                  %v261 = vld [vmem:[%s245 + $0x70] sm:$0xf]
                  %262 = vst [vmem:[%s246 + $0x1c] sm:$0xf] %v261
                  %v263 = vld [vmem:[%s245 + $0x80] sm:$0xf]
                  %264 = vst [vmem:[%s246 + $0x20] sm:$0xf] %v263
                  %v265 = vld [vmem:[%s245 + $0x90] sm:$0xf]
                  %266 = vst [vmem:[%s246 + $0x24] sm:$0xf] %v265
                  %v267 = vld [vmem:[%s245 + $0xa0] sm:$0xf]
                  %268 = vst [vmem:[%s246 + $0x28] sm:$0xf] %v267
                  %v269 = vld [vmem:[%s245 + $0xb0] sm:$0xf]
                  %270 = vst [vmem:[%s246 + $0x2c] sm:$0xf] %v269
                  %v271 = vld [vmem:[%s245 + $0xc0] sm:$0xf]
                  %272 = vst [vmem:[%s246 + $0x30] sm:$0xf] %v271
                  %v273 = vld [vmem:[%s245 + $0xd0] sm:$0xf]
                  %274 = vst [vmem:[%s246 + $0x34] sm:$0xf] %v273
                $region59: #{down_conv_forward.2} parent=46 // loop_footer
                  %s244 = sadd.s32 1, %s240
                $region60: #{down_conv_forward.2} parent=46 // loop_footer_branch
                  %239 = sbr.rel target = $region56
                $region61: #{down_conv_forward.2} parent=46 // loop_exit
                  _
              $region47: #{down_conv_forward.2} parent=31 // pred_fallthru
                _
            $region32: #{down_conv_forward.2} parent=27 // pred_fallthru
              _
            // Predicated region
            $region33: #{down_conv_forward.2} parent=27 // pred_check
              _
            $region34: #{down_conv_forward.2} parent=27 // pred_check_branch
              %190 = sbr.rel (0) target = $region36
            $region35: #{down_conv_forward.2} parent=27 // pred_region
              loop: start=0, step=1, limit=1
              $region37: #{down_conv_forward.2} parent=35 // loop_pre_header
                _
              $region38: #{down_conv_forward.2} parent=35 // loop_header
                %s193 = sphi 0, %s197
                %p194 = scmp.ge.s32.totalorder %s193, 1
                %s198 = sphi %s184, %s184
                %s199 = sphi %s180, %s180
              $region39: #{down_conv_forward.2} parent=35 // loop_header_branch
                %196 = sbr.rel (%p194) target = $region43
              $region40: #{down_conv_forward.2} parent=35 // loop_body
                %v200 = vld [vmem:[%s198] sm:$0xf]
                %201 = vst [vmem:[%s199] sm:$0xf] %v200
                %v202 = vld [vmem:[%s198 + $0x10] sm:$0xf]
                %203 = vst [vmem:[%s199 + $0x4] sm:$0xf] %v202
                %v204 = vld [vmem:[%s198 + $0x20] sm:$0xf]
                %205 = vst [vmem:[%s199 + $0x8] sm:$0xf] %v204
                %v206 = vld [vmem:[%s198 + $0x30] sm:$0xf]
                %207 = vst [vmem:[%s199 + $0xc] sm:$0xf] %v206
                %v208 = vld [vmem:[%s198 + $0x40] sm:$0xf]
                %209 = vst [vmem:[%s199 + $0x10] sm:$0xf] %v208
                %v210 = vld [vmem:[%s198 + $0x50] sm:$0xf]
                %211 = vst [vmem:[%s199 + $0x14] sm:$0xf] %v210
                %v212 = vld [vmem:[%s198 + $0x60] sm:$0xf]
                %213 = vst [vmem:[%s199 + $0x18] sm:$0xf] %v212
                %v214 = vld [vmem:[%s198 + $0x70] sm:$0xf]
                %215 = vst [vmem:[%s199 + $0x1c] sm:$0xf] %v214
                %v216 = vld [vmem:[%s198 + $0x80] sm:$0xf]
                %217 = vst [vmem:[%s199 + $0x20] sm:$0xf] %v216
                %v218 = vld [vmem:[%s198 + $0x90] sm:$0xf]
                %219 = vst [vmem:[%s199 + $0x24] sm:$0xf] %v218
                %v220 = vld [vmem:[%s198 + $0xa0] sm:$0xf]
                %221 = vst [vmem:[%s199 + $0x28] sm:$0xf] %v220
                %v222 = vld [vmem:[%s198 + $0xb0] sm:$0xf]
                %223 = vst [vmem:[%s199 + $0x2c] sm:$0xf] %v222
                %v224 = vld [vmem:[%s198 + $0xc0] sm:$0xf]
                %225 = vst [vmem:[%s199 + $0x30] sm:$0xf] %v224
                %v226 = vld [vmem:[%s198 + $0xd0] sm:$0xf]
                %227 = vst [vmem:[%s199 + $0x34] sm:$0xf] %v226
              $region41: #{down_conv_forward.2} parent=35 // loop_footer
                %s197 = sadd.s32 1, %s193
              $region42: #{down_conv_forward.2} parent=35 // loop_footer_branch
                %192 = sbr.rel target = $region38
              $region43: #{down_conv_forward.2} parent=35 // loop_exit
                _
            $region36: #{down_conv_forward.2} parent=27 // pred_fallthru
              _
          $region28: #{down_conv_forward.2} parent=23 // pred_fallthru
            _
          %275 = vnop
        $region24: #{down_conv_forward.2} parent=19 // pred_fallthru
          _
      $region20: #{down_conv_forward.2} parent=5 // pred_fallthru
        _
      %p276 = scmp.le.s32.totalorder 1, %s11
      %p277 = scmp.lt.s32.totalorder %s11, 9
      %p278 = pnand %p276, %p277
      %p279 = pneg %p278
      // Predicated region
      $region62: #{down_conv_forward.2} parent=5 // pred_check
        _
      $region63: #{down_conv_forward.2} parent=5 // pred_check_branch
        %281 = sbr.rel (%p278) target = $region65
      $region64: #{down_conv_forward.2} parent=5 // pred_region
        %s282 = ssub.s32 %s11, 1
        %s283 = sand.u32 %s38, 1
        %s284 = sand.u32 %s38, 1
        %s285 = smul.addr %s284, 56
        %s286 = scalar_lea.vmem [#allocation2], %s285
        // Predicated region
        $region66: #{down_conv_forward.2} parent=64 // pred_check
          %p287 = pneg %p51
        $region67: #{down_conv_forward.2} parent=64 // pred_check_branch
          %289 = sbr.rel (%p287) target = $region69
        $region68: #{down_conv_forward.2} parent=64 // pred_region
          _
        $region69: #{down_conv_forward.2} parent=64 // pred_fallthru
          _
        %s290 = sand.u32 %s38, 1
        %s291 = sand.u32 %s38, 1
        %s292 = smul.addr %s291, 56
        %s293 = scalar_lea.vmem [#allocation2], %s292
        %p294 = pneg %p51
        %p295 = pneg %p48
        %p296 = pneg %p72
        %p297 = pneg %p69
        %p298 = pneg %p100
        %p299 = pneg %p97
        %p300 = scmp.lt.s32.totalorder %s20, 1
        %s301 = scalar_select %p300, %s20, 1
        %p302 = scmp.lt.s32.totalorder %s21, 3
        %s303 = scalar_select %p302, %s21, 3
        %s304 = smul.addr %s301, 4
        %s305 = sadd.s32 %s303, %s304
        %s306 = smul.addr %s305, 4
        %s307 = scalar_lea.vmem %s2, %s306
        %p308 = pneg %p126
        %p309 = pneg %p123
        %p310 = scmp.lt.s32.totalorder %s20, 1
        %s311 = scalar_select %p310, %s20, 1
        %s312 = smul.addr %s311, 8
        %s313 = scalar_lea.vmem %s3, %s312
        %p314 = pneg %p152
        %p315 = pneg %p149
        %p316 = scmp.lt.s32.totalorder %s20, 1
        %s317 = scalar_select %p316, %s20, 1
        %s318 = smul.addr %s317, 8
        %s319 = scalar_lea.vmem %s4, %s318
        %p320 = scmp.lt.s32.totalorder %s20, 1
        %s321 = scalar_select %p320, %s20, 1
        %p322 = scmp.lt.s32.totalorder %s21, 3
        %s323 = scalar_select %p322, %s21, 3
        %s324 = smul.addr %s321, 4
        %s325 = sadd.s32 %s323, %s324
        %s326 = smul.addr %s325, 4
        %s327 = scalar_lea.vmem %s2, %s326
        %p328 = scmp.lt.s32.totalorder %s20, 1
        %s329 = scalar_select %p328, %s20, 1
        %s330 = smul.addr %s329, 8
        %s331 = scalar_lea.vmem %s3, %s330
        %p332 = scmp.lt.s32.totalorder %s20, 1
        %s333 = scalar_select %p332, %s20, 1
        %s334 = smul.addr %s333, 8
        %s335 = scalar_lea.vmem %s4, %s334
        %p337 = scmp.eq.s32.totalorder %s21, 0
        // Predicated region
        $region70: #{down_conv_forward.2} parent=64 // pred_check
          %p338 = pneg %p337
        $region71: #{down_conv_forward.2} parent=64 // pred_check_branch
          %340 = sbr.rel (%p338) target = $region73
        $region72: #{down_conv_forward.2} parent=64 // pred_region
          %vm341 = vcmask 7168
          %342 = vst.msk [vmem:[%s331] sm:$0xff] %vm341, 0.0
          %343 = vst.msk [vmem:[%s335] sm:$0xff] %vm341, 0.0
        $region73: #{down_conv_forward.2} parent=64 // pred_fallthru
          _
        %v344 = vld [vmem:[%s1] sm:$0xf]
        %v345 = vld [vmem:[%s286] sm:$0xf]
        %v346 = vld [vmem:[%s286 + $0x4] sm:$0xf]
        %v347 = vld [vmem:[%s286 + $0x8] sm:$0xf]
        %v348 = vld [vmem:[%s286 + $0xc] sm:$0xf]
        %v349 = vld [vmem:[%s286 + $0x10] sm:$0xf]
        %v350 = vld [vmem:[%s286 + $0x14] sm:$0xf]
        %v351 = vld [vmem:[%s286 + $0x18] sm:$0xf]
        %v352 = vld [vmem:[%s286 + $0x1c] sm:$0xf]
        %v353 = vld [vmem:[%s286 + $0x20] sm:$0xf]
        %v354 = vld [vmem:[%s286 + $0x24] sm:$0xf]
        %v355 = vld [vmem:[%s286 + $0x28] sm:$0xf]
        %v356 = vld [vmem:[%s286 + $0x2c] sm:$0xf]
        %v357 = vld [vmem:[%s286 + $0x30] sm:$0xf]
        %v358 = vld [vmem:[%s286 + $0x34] sm:$0x3]
        %v373 = vunpack.c.l.b16 %v345
        %v374 = vunpack.c.l.b16 %v346
        %v375 = vunpack.c.l.b16 %v347
        %v376 = vunpack.c.l.b16 %v348
        %v377 = vunpack.c.l.b16 %v349
        %v378 = vunpack.c.l.b16 %v350
        %v379 = vunpack.c.l.b16 %v351
        %v380 = vunpack.c.l.b16 %v352
        %v381 = vunpack.c.l.b16 %v353
        %v382 = vunpack.c.l.b16 %v354
        %v383 = vunpack.c.l.b16 %v355
        %v384 = vunpack.c.l.b16 %v356
        %v385 = vunpack.c.l.b16 %v357
        %v386 = vunpack.c.l.b16 %v358
        %v387 = vpack.c.b16 %v374, %v373
        %v388 = vpack.c.b16 %v376, %v375
        %v389 = vpack.c.b16 %v378, %v377
        %v390 = vpack.c.b16 %v380, %v379
        %v391 = vpack.c.b16 %v382, %v381
        %v392 = vpack.c.b16 %v384, %v383
        %v393 = vpack.c.b16 %v386, %v385
        %vm400 = vcmask 883712
        %v402 = vsel %vm400, %v344, 0
        %vm404 = vcmask 1045504
        %v406 = vsel %vm404, %v393, 0
        %408 = vmatprep.subr.bf16.mxu0 0
        %409 = vmatpush1.bf16.msra.mxu0 %v387
        %410 = vmatprep.subr.bf16.mxu0 0
        %411 = vmatpush1.bf16.msra.mxu0 %v388
        %412 = vmatprep.subr.bf16.mxu0 0
        %413 = vmatpush1.bf16.msra.mxu0 %v389
        %414 = vmatprep.subr.bf16.mxu0 0
        %415 = vmatpush1.bf16.msra.mxu0 %v390
        %416 = vmatprep.subr.bf16.mxu0 0
        %417 = vmatpush1.bf16.msra.mxu0 %v391
        %418 = vmatprep.subr.bf16.mxu0 0
        %419 = vmatpush1.bf16.msra.mxu0 %v392
        %420 = vmatprep.subr.bf16.mxu0 0
        %421 = vmatpush1.bf16.msra.mxu0 %v406
        %422 = vmatprep.subr.bf16.mxu0 0
        %423 = vmatpush1.bf16.msra.mxu0 0
        %424 = vmatprep.subr.bf16.mxu0 0
        %425 = vmatpush1.bf16.msra.mxu0 0
        %426 = vmatprep.subr.bf16.mxu0 0
        %427 = vmatpush1.bf16.msra.mxu0 0
        %428 = vmatprep.subr.bf16.mxu0 0
        %429 = vmatpush1.bf16.msra.mxu0 0
        %430 = vmatprep.subr.bf16.mxu0 0
        %431 = vmatpush1.bf16.msra.mxu0 0
        %432 = vmatprep.subr.bf16.mxu0 0
        %433 = vmatpush1.bf16.msra.mxu0 0
        %434 = vmatprep.subr.bf16.mxu0 0
        %435 = vmatpush1.bf16.msra.mxu0 0
        %436 = vmatprep.subr.bf16.mxu0 0
        %437 = vmatpush1.bf16.msra.mxu0 0
        %438 = vmatprep.subr.bf16.mxu0 0
        %439 = vmatpush1.bf16.msra.mxu0 0
        %440 = vmatprep.mubr.bf16.mxu0 0
        %441 = vmatmul.mubr.bf16.gmra.mrb[0].mxu0 %v402
        %v442 = vpop.f32.mrb[0].mxu0
        %v443 = vadd.f32 0.0, %v442
        %v444 = vpop.f32.mrb[0].mxu0
        %v445 = vpop.f32.mrb[0].mxu0
        %v446 = vpop.f32.mrb[0].mxu0
        %447 = vdwg.mxu0
        %v448 = vld [vmem:[%s331] sm:$0xff]
        %449 = vadd.xlane.f32.xlu0 %v443
        %v450 = vpop.xlane.xlu0 %449
        %v451 = vadd.f32 %v448, %v450
        %vm452 = vcmask 7168
        %453 = vst.msk [vmem:[%s331] sm:$0xff] %vm452, %v451
        %v454 = vld [vmem:[%s335] sm:$0xff]
        %v455 = vmul.f32 %v443, %v443
        %456 = vadd.xlane.f32.xlu0 %v455
        %v457 = vpop.xlane.xlu0 %456
        %v458 = vadd.f32 %v454, %v457
        %459 = vst.msk [vmem:[%s335] sm:$0xff] %vm452, %v458
        %v460 = vpack.c.bf16 %v443, %v443
        %461 = vst [vmem:[%s327] sm:$0xf] %v460
        %p462 = scmp.lt.s32.totalorder %s20, 1
        %s463 = scalar_select %p462, %s20, 1
        %p464 = scmp.lt.s32.totalorder %s21, 3
        %s465 = scalar_select %p464, %s21, 3
        %s466 = smul.addr %s463, 4
        %s467 = sadd.s32 %s465, %s466
        %s468 = smul.addr %s467, 4
        %s469 = scalar_lea.vmem %s2, %s468
        %p470 = scmp.lt.s32.totalorder %s20, 1
        %s471 = scalar_select %p470, %s20, 1
        %s472 = smul.addr %s471, 8
        %s473 = scalar_lea.vmem %s3, %s472
        %p474 = scmp.lt.s32.totalorder %s20, 1
        %s475 = scalar_select %p474, %s20, 1
        %s476 = smul.addr %s475, 8
        %s477 = scalar_lea.vmem %s4, %s476
        // Predicated region
        $region74: #{down_conv_forward.2} parent=64 // pred_check
          %p478 = pneg %p97
        $region75: #{down_conv_forward.2} parent=64 // pred_check_branch
          %480 = sbr.rel (%p478) target = $region77
        $region76: #{down_conv_forward.2} parent=64 // pred_region
          _
        $region77: #{down_conv_forward.2} parent=64 // pred_fallthru
          _
        // Predicated region
        $region78: #{down_conv_forward.2} parent=64 // pred_check
          %p481 = pneg %p123
        $region79: #{down_conv_forward.2} parent=64 // pred_check_branch
          %483 = sbr.rel (%p481) target = $region81
        $region80: #{down_conv_forward.2} parent=64 // pred_region
          _
        $region81: #{down_conv_forward.2} parent=64 // pred_fallthru
          _
        // Predicated region
        $region82: #{down_conv_forward.2} parent=64 // pred_check
          %p484 = pneg %p149
        $region83: #{down_conv_forward.2} parent=64 // pred_check_branch
          %486 = sbr.rel (%p484) target = $region85
        $region84: #{down_conv_forward.2} parent=64 // pred_region
          _
        $region85: #{down_conv_forward.2} parent=64 // pred_fallthru
          _
      $region65: #{down_conv_forward.2} parent=5 // pred_fallthru
        _
      %p487 = scmp.le.s32.totalorder 2, %s11
      // Predicated region
      $region86: #{down_conv_forward.2} parent=5 // pred_check
        %p488 = pneg %p487
      $region87: #{down_conv_forward.2} parent=5 // pred_check_branch
        %490 = sbr.rel (%p488) target = $region89
      $region88: #{down_conv_forward.2} parent=5 // pred_region
        %s491 = ssub.s32 %s11, 2
        // Predicated region
        $region90: #{down_conv_forward.2} parent=88 // pred_check
          %p492 = pneg %p103
        $region91: #{down_conv_forward.2} parent=88 // pred_check_branch
          %494 = sbr.rel (%p492) target = $region93
        $region92: #{down_conv_forward.2} parent=88 // pred_region
          %p495 = scmp.lt.s32.totalorder %s22, 1
          %s496 = scalar_select %p495, %s22, 1
          %p497 = scmp.lt.s32.totalorder %s23, 3
          %s498 = scalar_select %p497, %s23, 3
          %s499 = smul.addr %s496, 4
          %s500 = sadd.s32 %s498, %s499
          %s501 = smul.addr %s500, 4
          %s502 = scalar_lea.vmem %s2, %s501
        $region93: #{down_conv_forward.2} parent=88 // pred_fallthru
          _
        // Predicated region
        $region94: #{down_conv_forward.2} parent=88 // pred_check
          %p503 = pneg %p129
        $region95: #{down_conv_forward.2} parent=88 // pred_check_branch
          %505 = sbr.rel (%p503) target = $region97
        $region96: #{down_conv_forward.2} parent=88 // pred_region
          %p506 = scmp.lt.s32.totalorder %s22, 1
          %s507 = scalar_select %p506, %s22, 1
          %s508 = smul.addr %s507, 8
          %s509 = scalar_lea.vmem %s3, %s508
        $region97: #{down_conv_forward.2} parent=88 // pred_fallthru
          _
        // Predicated region
        $region98: #{down_conv_forward.2} parent=88 // pred_check
          %p510 = pneg %p155
        $region99: #{down_conv_forward.2} parent=88 // pred_check_branch
          %512 = sbr.rel (%p510) target = $region101
        $region100: #{down_conv_forward.2} parent=88 // pred_region
          %p513 = scmp.lt.s32.totalorder %s22, 1
          %s514 = scalar_select %p513, %s22, 1
          %s515 = smul.addr %s514, 8
          %s516 = scalar_lea.vmem %s4, %s515
        $region101: #{down_conv_forward.2} parent=88 // pred_fallthru
          _
      $region89: #{down_conv_forward.2} parent=5 // pred_fallthru
        _
    $region6: #{down_conv_forward.2} parent=1 // loop_footer
      %s15 = sadd.s32 1, %s11
    $region7: #{down_conv_forward.2} parent=1 // loop_footer_branch
      %10 = sbr.rel target = $region3
    $region8: #{down_conv_forward.2} parent=1 // loop_exit
      _

</llo_original>
